<compile_context>
chip_gen: v7x
topology: tpu7x:2x2x1
jax: 0.10.0
libtpu: 0.0.40
codegen_flags: <defaults>
</compile_context>

<pallas_src>
import jax
import jax.numpy as jnp
from jax.experimental import pallas as pl
from jax.experimental.pallas import tpu as pltpu


def autoencoder_kernel(x_ref, w1_ref, b1_ref, w2h_ref, b2h_ref, o_ref):
    # x_ref: (DIN, SUB, 128) f32 in VMEM (batch tile, dense sublane/lane layout).
    # w1_ref (DIN, DH), b1_ref (DH,), w2h_ref (DH, DOUT), b2h_ref (DOUT,) in SMEM.
    #   w2h/b2h already carry the 0.5 sigmoid pre-scale.
    # o_ref: (DOUT, SUB, 128) f32 in VMEM.
    din = x_ref.shape[0]
    dh = w1_ref.shape[1]
    dout = w2h_ref.shape[1]

    # Encoder: h[j] = relu(sum_k w1[k, j] * x[k] + b1[j]).
    # Each x row is loaded from VMEM exactly once and reused for every hidden unit.
    h_acc = [None] * dh
    for k in range(din):
        xk = x_ref[k]  # dense (SUB, 128) tile
        for j in range(dh):
            term = w1_ref[k, j] * xk
            h_acc[j] = term if k == 0 else h_acc[j] + term
    h = [jnp.maximum(h_acc[j] + b1_ref[j], 0.0) for j in range(dh)]

    # Decoder: y[i] = sum_j (0.5*w2[j, i]) * h[j] + 0.5*b2[i];
    # sigmoid(2*y[i]) == 0.5*tanh(y[i]) + 0.5. Store each row directly (no concat).
    for i in range(dout):
        acc = w2h_ref[0, i] * h[0]
        for j in range(1, dh):
            acc = acc + w2h_ref[j, i] * h[j]
        acc = acc + b2h_ref[i]
        o_ref[i] = (jnp.tanh(acc) * 0.5 + 0.5).astype(o_ref.dtype)


def _round_up(n, m):
    return ((n + m - 1) // m) * m


def _choose_tiling(batch, cap=65536):
    """Return (padded_batch, batch_tile). Tile is lane/sublane dense.

    - batch <= cap: one full-array block, grid=(1,) (padded to a multiple of 128).
    - batch  > cap: pad to a multiple of 1024 and use the largest tile (multiple of
      1024, <= cap) that divides it, so the block's second-last dim is a multiple of 8.
    Double-buffered in+out blocks at the cap are ~2.6 MiB -> safe on v5e/v6e/v7x VMEM.
    """
    if batch <= cap:
        bp = _round_up(max(batch, 128), 128)
        return bp, bp
    bp = _round_up(batch, 1024)
    tb = cap
    while bp % tb != 0:
        tb -= 1024
    return bp, tb


def autoencoder_forward_fm(x_fm, w1, b1, w2, b2, *, block_b=None):
    """Feature-major forward pass (the fast path — no relayout around the kernel).

    x_fm: (5, B) float32, batch on the last (lane) axis.
    w1: (5, 2), b1: (2,), w2: (2, 5), b2: (5,)  -- weights stored as (in, out).
    Returns (5, B): sigmoid(relu(x @ w1 + b1) @ w2 + b2), feature-major.
    """
    din, batch = x_fm.shape
    dh = w1.shape[1]
    dout = w2.shape[1]
    assert w1.shape == (din, dh) and w2.shape == (dh, dout)
    assert b1.shape == (dh,) and b2.shape == (dout,)

    if block_b is None:
        bp, tb = _choose_tiling(batch)
    else:
        bp, tb = _round_up(max(batch, block_b), block_b), block_b
    assert bp % 128 == 0 and tb % 128 == 0 and bp % tb == 0

    if bp != batch:
        # Only awkward (non multiple-of-128 / non-divisible) batches pay this copy.
        x_fm = jnp.pad(x_fm, ((0, 0), (0, bp - batch)))

    # Free reinterpret: (DIN, B) -> (DIN, B//128, 128). Every kernel operand becomes
    # a dense (TB//128, 128) tile -> full 8-sublane VPU occupancy, unmasked vst.
    x3 = x_fm.reshape(din, bp // 128, 128)
    sub = tb // 128

    # Fold the sigmoid's 0.5 pre-scale into the decoder parameters.
    w2h = w2 * 0.5
    b2h = b2 * 0.5

    out3 = pl.pallas_call(
        autoencoder_kernel,
        out_shape=jax.ShapeDtypeStruct((dout, bp // 128, 128), x_fm.dtype),
        grid=(bp // tb,),
        in_specs=[
            # Activations: batch-tiled, auto double-buffered by BlockSpec pipelining.
            pl.BlockSpec((din, sub, 128), lambda i: (0, i, 0)),
            # Parameters: whole arrays resident in SMEM (no per-step DMA, scalar reads).
            pl.BlockSpec(memory_space=pltpu.MemorySpace.SMEM),  # w1
            pl.BlockSpec(memory_space=pltpu.MemorySpace.SMEM),  # b1
            pl.BlockSpec(memory_space=pltpu.MemorySpace.SMEM),  # w2 * 0.5
            pl.BlockSpec(memory_space=pltpu.MemorySpace.SMEM),  # b2 * 0.5
        ],
        out_specs=pl.BlockSpec((dout, sub, 128), lambda i: (0, i, 0)),
        compiler_params=pltpu.CompilerParams(
            dimension_semantics=("parallel",),  # shard batch tiles across cores on v7x
        ),
    )(x3, w1, b1, w2h, b2h)

    out_fm = out3.reshape(dout, bp)
    if bp != batch:
        out_fm = out_fm[:, :batch]
    return out_fm


def init_params(key):
    # Mirrors nn.Linear default init: U(-1/sqrt(fan_in), 1/sqrt(fan_in)) for W and b.
    k1, k2, k3, k4 = jax.random.split(key, 4)
    din, dh, dout = 5, 2, 5
    bound1 = 1.0 / jnp.sqrt(din)
    bound2 = 1.0 / jnp.sqrt(dh)
    # Stored as (in, out) — transpose of PyTorch's (out, in) — so the math is x @ W + b.
    w1 = jax.random.uniform(k1, (din, dh), jnp.float32, -bound1, bound1)
    b1 = jax.random.uniform(k2, (dh,), jnp.float32, -bound1, bound1)
    w2 = jax.random.uniform(k3, (dh, dout), jnp.float32, -bound2, bound2)
    b2 = jax.random.uniform(k4, (dout,), jnp.float32, -bound2, bound2)
    return w1, b1, w2, b2


if __name__ == "__main__":
    key = jax.random.PRNGKey(0)
    kx, kp = jax.random.split(key)
    w1, b1, w2, b2 = init_params(kp)

    # Pure-JAX reference (same math as the PyTorch module, feature-major layout).
    def ref_fm(x_fm):
        h = jnp.maximum(w1.T @ x_fm + b1[:, None], 0.0)
        return 1.0 / (1.0 + jnp.exp(-(w2.T @ h + b2[:, None])))

    # Case 1: batch is a multiple of 128 -> single full block, grid=(1,), no padding,
    # no relayout anywhere on the kernel path.
    batch1 = 1024
    x1 = jax.random.normal(kx, (5, batch1), jnp.float32)
    out1 = jax.block_until_ready(autoencoder_forward_fm(x1, w1, b1, w2, b2))
    assert out1.shape == (5, batch1)
    assert jnp.allclose(out1, ref_fm(x1), atol=1e-5, rtol=1e-5)

    # Case 2: odd batch -> padded to a multiple of 128 internally, sliced back.
    batch2 = 200
    x2 = jax.random.normal(jax.random.fold_in(kx, 1), (5, batch2), jnp.float32)
    out2 = jax.block_until_ready(autoencoder_forward_fm(x2, w1, b1, w2, b2))
    assert out2.shape == (5, batch2)
    assert jnp.allclose(out2, ref_fm(x2), atol=1e-5, rtol=1e-5)

    print("KERNEL_OK")
</pallas_src>

<mosaic_0001>
module attributes {stable_mosaic.version = 11 : i64} {
  func.func @autoencoder_kernel(%arg0: i32, %arg1: memref<5x8x128xf32, #tpu.memory_space<vmem>>, %arg2: memref<5x2xf32, #tpu.memory_space<smem>>, %arg3: memref<2xf32, #tpu.memory_space<smem>>, %arg4: memref<2x5xf32, #tpu.memory_space<smem>>, %arg5: memref<5xf32, #tpu.memory_space<smem>>, %arg6: memref<5x8x128xf32, #tpu.memory_space<vmem>>) attributes {dimension_semantics = [#tpu.dimension_semantics<parallel>], iteration_bounds = array<i64: 1>, scalar_prefetch = 0 : i64, scratch_operands = 0 : i64, tpu.core_type = #tpu.core_type<tc>, window_params = [{transform_indices = @transform_0, window_bounds = array<i64: 5, 8, 128>}, {transform_indices = @transform_1, window_bounds = array<i64: 5, 2>}, {transform_indices = @transform_2, window_bounds = array<i64: 2>}, {transform_indices = @transform_3, window_bounds = array<i64: 2, 5>}, {transform_indices = @transform_4, window_bounds = array<i64: 5>}, {transform_indices = @transform_5, window_bounds = array<i64: 5, 8, 128>}]} {
    %c0 = arith.constant 0 : index
    %c0_0 = arith.constant 0 : index
    %c0_1 = arith.constant 0 : index
    %0 = vector.load %arg1[%c0, %c0_0, %c0_1] : memref<5x8x128xf32, #tpu.memory_space<vmem>>, vector<1x8x128xf32>
    %1 = vector.shape_cast %0 : vector<1x8x128xf32> to vector<8x128xf32>
    %c0_2 = arith.constant 0 : index
    %c0_3 = arith.constant 0 : index
    %2 = memref.load %arg2[%c0_2, %c0_3] : memref<5x2xf32, #tpu.memory_space<smem>>
    %3 = vector.broadcast %2 : f32 to vector<8x128xf32>
    %4 = arith.mulf %3, %1 : vector<8x128xf32>
    %c0_4 = arith.constant 0 : index
    %c1 = arith.constant 1 : index
    %5 = memref.load %arg2[%c0_4, %c1] : memref<5x2xf32, #tpu.memory_space<smem>>
    %6 = vector.broadcast %5 : f32 to vector<8x128xf32>
    %7 = arith.mulf %6, %1 : vector<8x128xf32>
    %c1_5 = arith.constant 1 : index
    %c0_6 = arith.constant 0 : index
    %c0_7 = arith.constant 0 : index
    %8 = vector.load %arg1[%c1_5, %c0_6, %c0_7] : memref<5x8x128xf32, #tpu.memory_space<vmem>>, vector<1x8x128xf32>
    %9 = vector.shape_cast %8 : vector<1x8x128xf32> to vector<8x128xf32>
    %c1_8 = arith.constant 1 : index
    %c0_9 = arith.constant 0 : index
    %10 = memref.load %arg2[%c1_8, %c0_9] : memref<5x2xf32, #tpu.memory_space<smem>>
    %11 = vector.broadcast %10 : f32 to vector<8x128xf32>
    %12 = arith.mulf %11, %9 : vector<8x128xf32>
    %13 = arith.addf %4, %12 : vector<8x128xf32>
    %c1_10 = arith.constant 1 : index
    %c1_11 = arith.constant 1 : index
    %14 = memref.load %arg2[%c1_10, %c1_11] : memref<5x2xf32, #tpu.memory_space<smem>>
    %15 = vector.broadcast %14 : f32 to vector<8x128xf32>
    %16 = arith.mulf %15, %9 : vector<8x128xf32>
    %17 = arith.addf %7, %16 : vector<8x128xf32>
    %c2 = arith.constant 2 : index
    %c0_12 = arith.constant 0 : index
    %c0_13 = arith.constant 0 : index
    %18 = vector.load %arg1[%c2, %c0_12, %c0_13] : memref<5x8x128xf32, #tpu.memory_space<vmem>>, vector<1x8x128xf32>
    %19 = vector.shape_cast %18 : vector<1x8x128xf32> to vector<8x128xf32>
    %c2_14 = arith.constant 2 : index
    %c0_15 = arith.constant 0 : index
    %20 = memref.load %arg2[%c2_14, %c0_15] : memref<5x2xf32, #tpu.memory_space<smem>>
    %21 = vector.broadcast %20 : f32 to vector<8x128xf32>
    %22 = arith.mulf %21, %19 : vector<8x128xf32>
    %23 = arith.addf %13, %22 : vector<8x128xf32>
    %c2_16 = arith.constant 2 : index
    %c1_17 = arith.constant 1 : index
    %24 = memref.load %arg2[%c2_16, %c1_17] : memref<5x2xf32, #tpu.memory_space<smem>>
    %25 = vector.broadcast %24 : f32 to vector<8x128xf32>
    %26 = arith.mulf %25, %19 : vector<8x128xf32>
    %27 = arith.addf %17, %26 : vector<8x128xf32>
    %c3 = arith.constant 3 : index
    %c0_18 = arith.constant 0 : index
    %c0_19 = arith.constant 0 : index
    %28 = vector.load %arg1[%c3, %c0_18, %c0_19] : memref<5x8x128xf32, #tpu.memory_space<vmem>>, vector<1x8x128xf32>
    %29 = vector.shape_cast %28 : vector<1x8x128xf32> to vector<8x128xf32>
    %c3_20 = arith.constant 3 : index
    %c0_21 = arith.constant 0 : index
    %30 = memref.load %arg2[%c3_20, %c0_21] : memref<5x2xf32, #tpu.memory_space<smem>>
    %31 = vector.broadcast %30 : f32 to vector<8x128xf32>
    %32 = arith.mulf %31, %29 : vector<8x128xf32>
    %33 = arith.addf %23, %32 : vector<8x128xf32>
    %c3_22 = arith.constant 3 : index
    %c1_23 = arith.constant 1 : index
    %34 = memref.load %arg2[%c3_22, %c1_23] : memref<5x2xf32, #tpu.memory_space<smem>>
    %35 = vector.broadcast %34 : f32 to vector<8x128xf32>
    %36 = arith.mulf %35, %29 : vector<8x128xf32>
    %37 = arith.addf %27, %36 : vector<8x128xf32>
    %c4 = arith.constant 4 : index
    %c0_24 = arith.constant 0 : index
    %c0_25 = arith.constant 0 : index
    %38 = vector.load %arg1[%c4, %c0_24, %c0_25] : memref<5x8x128xf32, #tpu.memory_space<vmem>>, vector<1x8x128xf32>
    %39 = vector.shape_cast %38 : vector<1x8x128xf32> to vector<8x128xf32>
    %c4_26 = arith.constant 4 : index
    %c0_27 = arith.constant 0 : index
    %40 = memref.load %arg2[%c4_26, %c0_27] : memref<5x2xf32, #tpu.memory_space<smem>>
    %41 = vector.broadcast %40 : f32 to vector<8x128xf32>
    %42 = arith.mulf %41, %39 : vector<8x128xf32>
    %43 = arith.addf %33, %42 : vector<8x128xf32>
    %c4_28 = arith.constant 4 : index
    %c1_29 = arith.constant 1 : index
    %44 = memref.load %arg2[%c4_28, %c1_29] : memref<5x2xf32, #tpu.memory_space<smem>>
    %45 = vector.broadcast %44 : f32 to vector<8x128xf32>
    %46 = arith.mulf %45, %39 : vector<8x128xf32>
    %47 = arith.addf %37, %46 : vector<8x128xf32>
    %c0_30 = arith.constant 0 : index
    %48 = memref.load %arg3[%c0_30] : memref<2xf32, #tpu.memory_space<smem>>
    %49 = vector.broadcast %48 : f32 to vector<8x128xf32>
    %50 = arith.addf %43, %49 : vector<8x128xf32>
    %cst = arith.constant 0.000000e+00 : f32
    %51 = vector.broadcast %cst : f32 to vector<8x128xf32>
    %52 = arith.maximumf %50, %51 : vector<8x128xf32>
    %c1_31 = arith.constant 1 : index
    %53 = memref.load %arg3[%c1_31] : memref<2xf32, #tpu.memory_space<smem>>
    %54 = vector.broadcast %53 : f32 to vector<8x128xf32>
    %55 = arith.addf %47, %54 : vector<8x128xf32>
    %cst_32 = arith.constant 0.000000e+00 : f32
    %56 = vector.broadcast %cst_32 : f32 to vector<8x128xf32>
    %57 = arith.maximumf %55, %56 : vector<8x128xf32>
    %c0_33 = arith.constant 0 : index
    %c0_34 = arith.constant 0 : index
    %58 = memref.load %arg4[%c0_33, %c0_34] : memref<2x5xf32, #tpu.memory_space<smem>>
    %59 = vector.broadcast %58 : f32 to vector<8x128xf32>
    %60 = arith.mulf %59, %52 : vector<8x128xf32>
    %c1_35 = arith.constant 1 : index
    %c0_36 = arith.constant 0 : index
    %61 = memref.load %arg4[%c1_35, %c0_36] : memref<2x5xf32, #tpu.memory_space<smem>>
    %62 = vector.broadcast %61 : f32 to vector<8x128xf32>
    %63 = arith.mulf %62, %57 : vector<8x128xf32>
    %64 = arith.addf %60, %63 : vector<8x128xf32>
    %c0_37 = arith.constant 0 : index
    %65 = memref.load %arg5[%c0_37] : memref<5xf32, #tpu.memory_space<smem>>
    %66 = vector.broadcast %65 : f32 to vector<8x128xf32>
    %67 = arith.addf %64, %66 : vector<8x128xf32>
    %68 = math.tanh %67 : vector<8x128xf32>
    %cst_38 = arith.constant 5.000000e-01 : f32
    %69 = vector.broadcast %cst_38 : f32 to vector<8x128xf32>
    %70 = arith.mulf %68, %69 : vector<8x128xf32>
    %cst_39 = arith.constant 5.000000e-01 : f32
    %71 = vector.broadcast %cst_39 : f32 to vector<8x128xf32>
    %72 = arith.addf %70, %71 : vector<8x128xf32>
    %c0_40 = arith.constant 0 : index
    %c0_41 = arith.constant 0 : index
    %c0_42 = arith.constant 0 : index
    %73 = vector.load %arg6[%c0_40, %c0_41, %c0_42] : memref<5x8x128xf32, #tpu.memory_space<vmem>>, vector<1x8x128xf32>
    %74 = vector.shape_cast %73 : vector<1x8x128xf32> to vector<8x128xf32>
    %75 = vector.shape_cast %72 : vector<8x128xf32> to vector<1x8x128xf32>
    tpu.vector_store %arg6[%c0_40, %c0_41, %c0_42], %75 {strides = array<i32>} : memref<5x8x128xf32, #tpu.memory_space<vmem>>, vector<1x8x128xf32>,
    %c0_43 = arith.constant 0 : index
    %c1_44 = arith.constant 1 : index
    %76 = memref.load %arg4[%c0_43, %c1_44] : memref<2x5xf32, #tpu.memory_space<smem>>
    %77 = vector.broadcast %76 : f32 to vector<8x128xf32>
    %78 = arith.mulf %77, %52 : vector<8x128xf32>
    %c1_45 = arith.constant 1 : index
    %c1_46 = arith.constant 1 : index
    %79 = memref.load %arg4[%c1_45, %c1_46] : memref<2x5xf32, #tpu.memory_space<smem>>
    %80 = vector.broadcast %79 : f32 to vector<8x128xf32>
    %81 = arith.mulf %80, %57 : vector<8x128xf32>
    %82 = arith.addf %78, %81 : vector<8x128xf32>
    %c1_47 = arith.constant 1 : index
    %83 = memref.load %arg5[%c1_47] : memref<5xf32, #tpu.memory_space<smem>>
    %84 = vector.broadcast %83 : f32 to vector<8x128xf32>
    %85 = arith.addf %82, %84 : vector<8x128xf32>
    %86 = math.tanh %85 : vector<8x128xf32>
    %cst_48 = arith.constant 5.000000e-01 : f32
    %87 = vector.broadcast %cst_48 : f32 to vector<8x128xf32>
    %88 = arith.mulf %86, %87 : vector<8x128xf32>
    %cst_49 = arith.constant 5.000000e-01 : f32
    %89 = vector.broadcast %cst_49 : f32 to vector<8x128xf32>
    %90 = arith.addf %88, %89 : vector<8x128xf32>
    %c1_50 = arith.constant 1 : index
    %c0_51 = arith.constant 0 : index
    %c0_52 = arith.constant 0 : index
    %91 = vector.load %arg6[%c1_50, %c0_51, %c0_52] : memref<5x8x128xf32, #tpu.memory_space<vmem>>, vector<1x8x128xf32>
    %92 = vector.shape_cast %91 : vector<1x8x128xf32> to vector<8x128xf32>
    %93 = vector.shape_cast %90 : vector<8x128xf32> to vector<1x8x128xf32>
    tpu.vector_store %arg6[%c1_50, %c0_51, %c0_52], %93 {strides = array<i32>} : memref<5x8x128xf32, #tpu.memory_space<vmem>>, vector<1x8x128xf32>,
    %c0_53 = arith.constant 0 : index
    %c2_54 = arith.constant 2 : index
    %94 = memref.load %arg4[%c0_53, %c2_54] : memref<2x5xf32, #tpu.memory_space<smem>>
    %95 = vector.broadcast %94 : f32 to vector<8x128xf32>
    %96 = arith.mulf %95, %52 : vector<8x128xf32>
    %c1_55 = arith.constant 1 : index
    %c2_56 = arith.constant 2 : index
    %97 = memref.load %arg4[%c1_55, %c2_56] : memref<2x5xf32, #tpu.memory_space<smem>>
    %98 = vector.broadcast %97 : f32 to vector<8x128xf32>
    %99 = arith.mulf %98, %57 : vector<8x128xf32>
    %100 = arith.addf %96, %99 : vector<8x128xf32>
    %c2_57 = arith.constant 2 : index
    %101 = memref.load %arg5[%c2_57] : memref<5xf32, #tpu.memory_space<smem>>
    %102 = vector.broadcast %101 : f32 to vector<8x128xf32>
    %103 = arith.addf %100, %102 : vector<8x128xf32>
    %104 = math.tanh %103 : vector<8x128xf32>
    %cst_58 = arith.constant 5.000000e-01 : f32
    %105 = vector.broadcast %cst_58 : f32 to vector<8x128xf32>
    %106 = arith.mulf %104, %105 : vector<8x128xf32>
    %cst_59 = arith.constant 5.000000e-01 : f32
    %107 = vector.broadcast %cst_59 : f32 to vector<8x128xf32>
    %108 = arith.addf %106, %107 : vector<8x128xf32>
    %c2_60 = arith.constant 2 : index
    %c0_61 = arith.constant 0 : index
    %c0_62 = arith.constant 0 : index
    %109 = vector.load %arg6[%c2_60, %c0_61, %c0_62] : memref<5x8x128xf32, #tpu.memory_space<vmem>>, vector<1x8x128xf32>
    %110 = vector.shape_cast %109 : vector<1x8x128xf32> to vector<8x128xf32>
    %111 = vector.shape_cast %108 : vector<8x128xf32> to vector<1x8x128xf32>
    tpu.vector_store %arg6[%c2_60, %c0_61, %c0_62], %111 {strides = array<i32>} : memref<5x8x128xf32, #tpu.memory_space<vmem>>, vector<1x8x128xf32>,
    %c0_63 = arith.constant 0 : index
    %c3_64 = arith.constant 3 : index
    %112 = memref.load %arg4[%c0_63, %c3_64] : memref<2x5xf32, #tpu.memory_space<smem>>
    %113 = vector.broadcast %112 : f32 to vector<8x128xf32>
    %114 = arith.mulf %113, %52 : vector<8x128xf32>
    %c1_65 = arith.constant 1 : index
    %c3_66 = arith.constant 3 : index
    %115 = memref.load %arg4[%c1_65, %c3_66] : memref<2x5xf32, #tpu.memory_space<smem>>
    %116 = vector.broadcast %115 : f32 to vector<8x128xf32>
    %117 = arith.mulf %116, %57 : vector<8x128xf32>
    %118 = arith.addf %114, %117 : vector<8x128xf32>
    %c3_67 = arith.constant 3 : index
    %119 = memref.load %arg5[%c3_67] : memref<5xf32, #tpu.memory_space<smem>>
    %120 = vector.broadcast %119 : f32 to vector<8x128xf32>
    %121 = arith.addf %118, %120 : vector<8x128xf32>
    %122 = math.tanh %121 : vector<8x128xf32>
    %cst_68 = arith.constant 5.000000e-01 : f32
    %123 = vector.broadcast %cst_68 : f32 to vector<8x128xf32>
    %124 = arith.mulf %122, %123 : vector<8x128xf32>
    %cst_69 = arith.constant 5.000000e-01 : f32
    %125 = vector.broadcast %cst_69 : f32 to vector<8x128xf32>
    %126 = arith.addf %124, %125 : vector<8x128xf32>
    %c3_70 = arith.constant 3 : index
    %c0_71 = arith.constant 0 : index
    %c0_72 = arith.constant 0 : index
    %127 = vector.load %arg6[%c3_70, %c0_71, %c0_72] : memref<5x8x128xf32, #tpu.memory_space<vmem>>, vector<1x8x128xf32>
    %128 = vector.shape_cast %127 : vector<1x8x128xf32> to vector<8x128xf32>
    %129 = vector.shape_cast %126 : vector<8x128xf32> to vector<1x8x128xf32>
    tpu.vector_store %arg6[%c3_70, %c0_71, %c0_72], %129 {strides = array<i32>} : memref<5x8x128xf32, #tpu.memory_space<vmem>>, vector<1x8x128xf32>,
    %c0_73 = arith.constant 0 : index
    %c4_74 = arith.constant 4 : index
    %130 = memref.load %arg4[%c0_73, %c4_74] : memref<2x5xf32, #tpu.memory_space<smem>>
    %131 = vector.broadcast %130 : f32 to vector<8x128xf32>
    %132 = arith.mulf %131, %52 : vector<8x128xf32>
    %c1_75 = arith.constant 1 : index
    %c4_76 = arith.constant 4 : index
    %133 = memref.load %arg4[%c1_75, %c4_76] : memref<2x5xf32, #tpu.memory_space<smem>>
    %134 = vector.broadcast %133 : f32 to vector<8x128xf32>
    %135 = arith.mulf %134, %57 : vector<8x128xf32>
    %136 = arith.addf %132, %135 : vector<8x128xf32>
    %c4_77 = arith.constant 4 : index
    %137 = memref.load %arg5[%c4_77] : memref<5xf32, #tpu.memory_space<smem>>
    %138 = vector.broadcast %137 : f32 to vector<8x128xf32>
    %139 = arith.addf %136, %138 : vector<8x128xf32>
    %140 = math.tanh %139 : vector<8x128xf32>
    %cst_78 = arith.constant 5.000000e-01 : f32
    %141 = vector.broadcast %cst_78 : f32 to vector<8x128xf32>
    %142 = arith.mulf %140, %141 : vector<8x128xf32>
    %cst_79 = arith.constant 5.000000e-01 : f32
    %143 = vector.broadcast %cst_79 : f32 to vector<8x128xf32>
    %144 = arith.addf %142, %143 : vector<8x128xf32>
    %c4_80 = arith.constant 4 : index
    %c0_81 = arith.constant 0 : index
    %c0_82 = arith.constant 0 : index
    %145 = vector.load %arg6[%c4_80, %c0_81, %c0_82] : memref<5x8x128xf32, #tpu.memory_space<vmem>>, vector<1x8x128xf32>
    %146 = vector.shape_cast %145 : vector<1x8x128xf32> to vector<8x128xf32>
    %147 = vector.shape_cast %144 : vector<8x128xf32> to vector<1x8x128xf32>
    tpu.vector_store %arg6[%c4_80, %c0_81, %c0_82], %147 {strides = array<i32>} : memref<5x8x128xf32, #tpu.memory_space<vmem>>, vector<1x8x128xf32>,
    return
  }
  func.func @transform_0(%arg0: i32) -> (i32, i32, i32) {
    %c0_i32 = arith.constant 0 : i32
    %c0_i32_0 = arith.constant 0 : i32
    %c0_i32_1 = arith.constant 0 : i32
    return %c0_i32, %arg0, %c0_i32_0 : i32, i32, i32
  }
  func.func @transform_1(%arg0: i32) -> (i32, i32) {
    %c0_i32 = arith.constant 0 : i32
    %c0_i32_0 = arith.constant 0 : i32
    %c0_i32_1 = arith.constant 0 : i32
    return %c0_i32, %c0_i32_0 : i32, i32
  }
  func.func @transform_2(%arg0: i32) -> i32 {
    %c0_i32 = arith.constant 0 : i32
    %c0_i32_0 = arith.constant 0 : i32
    return %c0_i32 : i32
  }
  func.func @transform_3(%arg0: i32) -> (i32, i32) {
    %c0_i32 = arith.constant 0 : i32
    %c0_i32_0 = arith.constant 0 : i32
    %c0_i32_1 = arith.constant 0 : i32
    return %c0_i32, %c0_i32_0 : i32, i32
  }
  func.func @transform_4(%arg0: i32) -> i32 {
    %c0_i32 = arith.constant 0 : i32
    %c0_i32_0 = arith.constant 0 : i32
    return %c0_i32 : i32
  }
  func.func @transform_5(%arg0: i32) -> (i32, i32, i32) {
    %c0_i32 = arith.constant 0 : i32
    %c0_i32_0 = arith.constant 0 : i32
    %c0_i32_1 = arith.constant 0 : i32
    return %c0_i32, %arg0, %c0_i32_0 : i32, i32, i32
  }
}

</mosaic_0001>

<llo_original>
// kernel: tpu_custom_call.1
$region0: #{tpu_custom_call.1}
  #allocation0 [shape = 'u32[]', space=smem, size = 0x4, offset = 0x4, fixed_abs, tag = 'smem constant byte address 0x4 - core index']
  #allocation1 [shape = 'u32[144,128]{1,0:T(1,128)}', space=vmem, size = 0x12000, scoped, tag = 'internal scratch']
  %s0 = inlined_call_operand.hbm [shape: f32[5,8,128], index: 0, kind: input, shape index: {}]
  %s1 = inlined_call_operand.vmem [shape: f32[5,2], index: 1, kind: input, shape index: {}]
  %s2 = inlined_call_operand.vmem [shape: f32[2], index: 2, kind: input, shape index: {}]
  %s3 = inlined_call_operand.vmem [shape: f32[2,5], index: 3, kind: input, shape index: {}]
  %s4 = inlined_call_operand.vmem [shape: f32[5], index: 4, kind: input, shape index: {}]
  %s5 = inlined_call_operand.hbm [shape: f32[5,8,128], index: 5, kind: output, shape index: {}]
  %s6 = sld [smem:[#allocation0]]
  $region50: #{tpu_custom_call.1} parent=0
    _
  %s8 = ssub.s32 1, %s6
  %s9 = scalar_select 0, %s8, %s6
  $region1: #{tpu_custom_call.1} parent=0
    #allocation2 [shape = 'u8[20480]{0}', space=vmem, size = 0x5000, scoped, tag = 'input window, operand 0, single buffered']
    #allocation3 [shape = 's32[1]{0}', space=sflag, size = 0x4, scoped, tag = 'scoped memory for tpu_custom_call.1']
    #allocation4 [shape = 's32[1]{0}', space=sflag, size = 0x4, scoped, tag = 'scoped memory for tpu_custom_call.1']
    #allocation5 [shape = 's32[1]{0}', space=sflag, size = 0x4, scoped, tag = 'scoped memory for tpu_custom_call.1']
    #allocation6 [shape = 'u8[4096]{0}', space=smem, size = 0x1000, scoped, tag = 'input window, operand 1, single buffered']
    #allocation7 [shape = 'u8[512]{0}', space=smem, size = 0x200, scoped, tag = 'input window, operand 2, single buffered']
    #allocation8 [shape = 's32[1]{0}', space=sflag, size = 0x4, scoped, tag = 'scoped memory for tpu_custom_call.1']
    #allocation9 [shape = 'u8[1024]{0}', space=smem, size = 0x400, scoped, tag = 'input window, operand 3, single buffered']
    #allocation10 [shape = 'u8[512]{0}', space=smem, size = 0x200, scoped, tag = 'input window, operand 4, single buffered']
    #allocation11 [shape = 's32[1]{0}', space=sflag, size = 0x4, scoped, tag = 'scoped memory for tpu_custom_call.1']
    #allocation12 [shape = 'u8[20480]{0}', space=vmem, size = 0x5000, scoped, tag = 'output window, operand 0, single buffered']
    %10 = vsyncpa [#allocation3], 0
    %11 = vsyncpa [#allocation5], 0
    %12 = vsyncpa [#allocation8], 0
    %13 = vsyncpa [#allocation11], 0
    %14 = vsyncpa [#allocation4], 0
    // Predicated region
    $region2: #{tpu_custom_call.1} parent=1 // pred_check
      _
    $region3: #{tpu_custom_call.1} parent=1 // pred_check_branch
      %16 = sbr.rel (0) target = $region5
    $region4: #{tpu_custom_call.1} parent=1 // pred_region
      %s18 = ssub.s32 640, 640
      %19 = vsyncadd [#allocation3], %s18
      %s20 = sshll.u32 [#allocation2], 4
      %s21 = int_to_ptr.vmem [resolvable:$true] %s20
      %26 = dma.hbm_to_vmem [thread:$0]  %s0, 640, %s21, [#allocation3], 128, 128, 8
    $region5: #{tpu_custom_call.1} parent=1 // pred_fallthru
      _
    // Predicated region
    $region6: #{tpu_custom_call.1} parent=1 // pred_check
      _
    $region7: #{tpu_custom_call.1} parent=1 // pred_check_branch
      %28 = sbr.rel (0) target = $region9
    $region8: #{tpu_custom_call.1} parent=1 // pred_region
      %s30 = ssub.s32 128, 128
      %31 = vsyncadd [#allocation5], %s30
      %s33 = sshll.u32 %s1, 4
      %s34 = int_to_ptr.vmem [resolvable:$true] %s33
      %36 = dma.vmem_to_smem %s34, 128, [#allocation6], [#allocation5]
    $region9: #{tpu_custom_call.1} parent=1 // pred_fallthru
      _
    // Predicated region
    $region10: #{tpu_custom_call.1} parent=1 // pred_check
      _
    $region11: #{tpu_custom_call.1} parent=1 // pred_check_branch
      %38 = sbr.rel (0) target = $region13
    $region12: #{tpu_custom_call.1} parent=1 // pred_region
      %s40 = ssub.s32 16, 16
      %41 = vsyncadd [#allocation8], %s40
      %s43 = sshll.u32 %s2, 4
      %s44 = int_to_ptr.vmem [resolvable:$true] %s43
      %46 = dma.vmem_to_smem %s44, 16, [#allocation7], [#allocation8]
    $region13: #{tpu_custom_call.1} parent=1 // pred_fallthru
      _
    // Predicated region
    $region14: #{tpu_custom_call.1} parent=1 // pred_check
      _
    $region15: #{tpu_custom_call.1} parent=1 // pred_check_branch
      %48 = sbr.rel (0) target = $region17
    $region16: #{tpu_custom_call.1} parent=1 // pred_region
      %s50 = ssub.s32 32, 32
      %51 = vsyncadd [#allocation8], %s50
      %s53 = sshll.u32 %s3, 4
      %s54 = int_to_ptr.vmem [resolvable:$true] %s53
      %56 = dma.vmem_to_smem %s54, 32, [#allocation9], [#allocation8]
    $region17: #{tpu_custom_call.1} parent=1 // pred_fallthru
      _
    // Predicated region
    $region18: #{tpu_custom_call.1} parent=1 // pred_check
      _
    $region19: #{tpu_custom_call.1} parent=1 // pred_check_branch
      %58 = sbr.rel (0) target = $region21
    $region20: #{tpu_custom_call.1} parent=1 // pred_region
      %s60 = ssub.s32 16, 16
      %61 = vsyncadd [#allocation11], %s60
      %s63 = sshll.u32 %s4, 4
      %s64 = int_to_ptr.vmem [resolvable:$true] %s63
      %66 = dma.vmem_to_smem %s64, 16, [#allocation10], [#allocation11]
    $region21: #{tpu_custom_call.1} parent=1 // pred_fallthru
      _
    // Predicated region
    $region22: #{tpu_custom_call.1} parent=1 // pred_check
      _
    $region23: #{tpu_custom_call.1} parent=1 // pred_check_branch
      %68 = sbr.rel (0) target = $region25
    $region24: #{tpu_custom_call.1} parent=1 // pred_region
      %69 = dma.done [#allocation3], 640
    $region25: #{tpu_custom_call.1} parent=1 // pred_fallthru
      _
    // Predicated region
    $region26: #{tpu_custom_call.1} parent=1 // pred_check
      _
    $region27: #{tpu_custom_call.1} parent=1 // pred_check_branch
      %71 = sbr.rel (0) target = $region29
    $region28: #{tpu_custom_call.1} parent=1 // pred_region
      %72 = dma.done [#allocation5], 128
    $region29: #{tpu_custom_call.1} parent=1 // pred_fallthru
      _
    // Predicated region
    $region30: #{tpu_custom_call.1} parent=1 // pred_check
      _
    $region31: #{tpu_custom_call.1} parent=1 // pred_check_branch
      %74 = sbr.rel (0) target = $region33
    $region32: #{tpu_custom_call.1} parent=1 // pred_region
      %75 = dma.done [#allocation8], 16
    $region33: #{tpu_custom_call.1} parent=1 // pred_fallthru
      _
    // Predicated region
    $region34: #{tpu_custom_call.1} parent=1 // pred_check
      _
    $region35: #{tpu_custom_call.1} parent=1 // pred_check_branch
      %77 = sbr.rel (0) target = $region37
    $region36: #{tpu_custom_call.1} parent=1 // pred_region
      %78 = dma.done [#allocation8], 32
    $region37: #{tpu_custom_call.1} parent=1 // pred_fallthru
      _
    // Predicated region
    $region38: #{tpu_custom_call.1} parent=1 // pred_check
      _
    $region39: #{tpu_custom_call.1} parent=1 // pred_check_branch
      %80 = sbr.rel (0) target = $region41
    $region40: #{tpu_custom_call.1} parent=1 // pred_region
      %81 = dma.done [#allocation11], 16
    $region41: #{tpu_custom_call.1} parent=1 // pred_fallthru
      _
    %82 = sfence
    %v83 = vld [vmem:[#allocation2] sm:$0xff]
    %s84 = sld [smem:[#allocation6]]
    %v85 = vstv %s84
    %v86 = vmul.f32 %v85, %v83
    %s87 = sld [smem:[#allocation6 + $0x1]]
    %v88 = vstv %s87
    %v89 = vmul.f32 %v88, %v83
    %s90 = scalar_lea.vmem [#allocation2], 8
    %v91 = vld [vmem:[%s90] sm:$0xff]
    %s92 = sld [smem:[#allocation6 + $0x80]]
    %v93 = vstv %s92
    %v94 = vmul.f32 %v93, %v91
    %v95 = vadd.f32 %v86, %v94
    %s96 = sld [smem:[#allocation6 + $0x81]]
    %v97 = vstv %s96
    %v98 = vmul.f32 %v97, %v91
    %v99 = vadd.f32 %v89, %v98
    %s100 = scalar_lea.vmem [#allocation2], 16
    %v101 = vld [vmem:[%s100] sm:$0xff]
    %s102 = sld [smem:[#allocation6 + $0x100]]
    %v103 = vstv %s102
    %v104 = vmul.f32 %v103, %v101
    %v105 = vadd.f32 %v95, %v104
    %s106 = sld [smem:[#allocation6 + $0x101]]
    %v107 = vstv %s106
    %v108 = vmul.f32 %v107, %v101
    %v109 = vadd.f32 %v99, %v108
    %s110 = scalar_lea.vmem [#allocation2], 24
    %v111 = vld [vmem:[%s110] sm:$0xff]
    %s112 = sld [smem:[#allocation6 + $0x180]]
    %v113 = vstv %s112
    %v114 = vmul.f32 %v113, %v111
    %v115 = vadd.f32 %v105, %v114
    %s116 = sld [smem:[#allocation6 + $0x181]]
    %v117 = vstv %s116
    %v118 = vmul.f32 %v117, %v111
    %v119 = vadd.f32 %v109, %v118
    %s120 = scalar_lea.vmem [#allocation2], 32
    %v121 = vld [vmem:[%s120] sm:$0xff]
    %s122 = sld [smem:[#allocation6 + $0x200]]
    %v123 = vstv %s122
    %v124 = vmul.f32 %v123, %v121
    %v125 = vadd.f32 %v115, %v124
    %s126 = sld [smem:[#allocation6 + $0x201]]
    %v127 = vstv %s126
    %v128 = vmul.f32 %v127, %v121
    %v129 = vadd.f32 %v119, %v128
    %s130 = sld [smem:[#allocation7]]
    %v131 = vstv %s130
    %v132 = vadd.f32 %v125, %v131
    %v133 = vmax.f32 %v132, 0.0
    %s134 = sld [smem:[#allocation7 + $0x1]]
    %v135 = vstv %s134
    %v136 = vadd.f32 %v129, %v135
    %v137 = vmax.f32 %v136, 0.0
    %s138 = sld [smem:[#allocation9]]
    %v139 = vstv %s138
    %v140 = vmul.f32 %v139, %v133
    %s141 = sld [smem:[#allocation9 + $0x80]]
    %v142 = vstv %s141
    %v143 = vmul.f32 %v142, %v137
    %v144 = vadd.f32 %v140, %v143
    %s145 = sld [smem:[#allocation10]]
    %v146 = vstv %s145
    %v147 = vadd.f32 %v144, %v146
    %v148 = vtanh.pop %v147
    %v149 = vmul.f32 %v148, 0.5
    %v150 = vadd.f32 %v149, 0.5
    %151 = vst [vmem:[#allocation12] sm:$0xff] %v150
    %s152 = sld [smem:[#allocation9 + $0x1]]
    %v153 = vstv %s152
    %v154 = vmul.f32 %v153, %v133
    %s155 = sld [smem:[#allocation9 + $0x81]]
    %v156 = vstv %s155
    %v157 = vmul.f32 %v156, %v137
    %v158 = vadd.f32 %v154, %v157
    %s159 = sld [smem:[#allocation10 + $0x1]]
    %v160 = vstv %s159
    %v161 = vadd.f32 %v158, %v160
    %v162 = vtanh.pop %v161
    %v163 = vmul.f32 %v162, 0.5
    %v164 = vadd.f32 %v163, 0.5
    %s165 = scalar_lea.vmem [#allocation12], 8
    %166 = vst [vmem:[%s165] sm:$0xff] %v164
    %s167 = sld [smem:[#allocation9 + $0x2]]
    %v168 = vstv %s167
    %v169 = vmul.f32 %v168, %v133
    %s170 = sld [smem:[#allocation9 + $0x82]]
    %v171 = vstv %s170
    %v172 = vmul.f32 %v171, %v137
    %v173 = vadd.f32 %v169, %v172
    %s174 = sld [smem:[#allocation10 + $0x2]]
    %v175 = vstv %s174
    %v176 = vadd.f32 %v173, %v175
    %v177 = vtanh.pop %v176
    %v178 = vmul.f32 %v177, 0.5
    %v179 = vadd.f32 %v178, 0.5
    %s180 = scalar_lea.vmem [#allocation12], 16
    %181 = vst [vmem:[%s180] sm:$0xff] %v179
    %s182 = sld [smem:[#allocation9 + $0x3]]
    %v183 = vstv %s182
    %v184 = vmul.f32 %v183, %v133
    %s185 = sld [smem:[#allocation9 + $0x83]]
    %v186 = vstv %s185
    %v187 = vmul.f32 %v186, %v137
    %v188 = vadd.f32 %v184, %v187
    %s189 = sld [smem:[#allocation10 + $0x3]]
    %v190 = vstv %s189
    %v191 = vadd.f32 %v188, %v190
    %v192 = vtanh.pop %v191
    %v193 = vmul.f32 %v192, 0.5
    %v194 = vadd.f32 %v193, 0.5
    %s195 = scalar_lea.vmem [#allocation12], 24
    %196 = vst [vmem:[%s195] sm:$0xff] %v194
    %s197 = sld [smem:[#allocation9 + $0x4]]
    %v198 = vstv %s197
    %v199 = vmul.f32 %v198, %v133
    %s200 = sld [smem:[#allocation9 + $0x84]]
    %v201 = vstv %s200
    %v202 = vmul.f32 %v201, %v137
    %v203 = vadd.f32 %v199, %v202
    %s204 = sld [smem:[#allocation10 + $0x4]]
    %v205 = vstv %s204
    %v206 = vadd.f32 %v203, %v205
    %v207 = vtanh.pop %v206
    %v208 = vmul.f32 %v207, 0.5
    %v209 = vadd.f32 %v208, 0.5
    %s210 = scalar_lea.vmem [#allocation12], 32
    %211 = vst [vmem:[%s210] sm:$0xff] %v209
    // Predicated region
    $region42: #{tpu_custom_call.1} parent=1 // pred_check
      _
    $region43: #{tpu_custom_call.1} parent=1 // pred_check_branch
      %213 = sbr.rel (0) target = $region45
    $region44: #{tpu_custom_call.1} parent=1 // pred_region
      %s215 = ssub.s32 640, 640
      %216 = vsyncadd [#allocation4], %s215
      %s217 = sshll.u32 [#allocation12], 4
      %s218 = int_to_ptr.vmem [resolvable:$true] %s217
      %223 = dma.vmem_to_hbm [thread:$0]  %s218, 640, %s5, [#allocation4], 128, 128, 8
    $region45: #{tpu_custom_call.1} parent=1 // pred_fallthru
      _
    // Predicated region
    $region46: #{tpu_custom_call.1} parent=1 // pred_check
      _
    $region47: #{tpu_custom_call.1} parent=1 // pred_check_branch
      %225 = sbr.rel (0) target = $region49
    $region48: #{tpu_custom_call.1} parent=1 // pred_region
      %226 = dma.done [#allocation4], 640
    $region49: #{tpu_custom_call.1} parent=1 // pred_fallthru
      _
    %227 = vsyncpa [#allocation3], 1
    %228 = vsyncpa [#allocation4], 1
    %229 = vsyncpa [#allocation5], 1
    %230 = vsyncpa [#allocation8], 1
    %231 = vsyncpa [#allocation11], 1

</llo_original>
